<compile_context>
chip_gen: v7x
topology: tpu7x:2x2x1
jax: 0.10.0
libtpu: 0.0.40
codegen_flags: <defaults>
</compile_context>

<pallas_src>
import functools
import math

import jax
import jax.numpy as jnp
from jax import lax
from jax.experimental import pallas as pl
from jax.experimental.pallas import tpu as pltpu

_EPS = 1e-8            # matches torch cosine_similarity eps (per-norm clamp)
_EPS_SQ = _EPS * _EPS


def _l2_normalize_f32(tile_ref, scale=1.0):
    """Load a [rows, D] tile, L2-normalize each row in f32, optionally scale."""
    x = tile_ref[...].astype(jnp.float32)
    ss = jnp.sum(x * x, axis=-1, keepdims=True)
    return x * (lax.rsqrt(jnp.maximum(ss, _EPS_SQ)) * scale)


# --------------------------------------------------------------------------------------
# temperature > 0 : dual log-softmax contrastive loss
# --------------------------------------------------------------------------------------
def _contrastive_softmax_kernel(
    yp_ref,       # [tm, D] y_pred row tile (blocked)
    yrow_ref,     # [tm, D] matching y row tile (blocked) -> diagonal only
    y_hbm,        # [N, D]  full y, left in HBM (memory_space=pl.ANY)
    out_ref,      # [1, 1]  scalar loss
    yts_ref,      # VMEM [N, D]      L2-normalized y rows (filled once at step 0)
    stage_ref,    # VMEM [chunk, D]  DMA staging buffer for the step-0 fill
    dma_sem,      # DMA semaphore (1,) for the step-0 fill
    colsum_ref,   # VMEM [1, N]      accumulated column exp-sums
    colmax_ref,   # VMEM [1, N]      running column max (shifted fallback only)
    acc_ref,      # VMEM [1, 1]      running sum_i (diag_i - lam * lse_row_i)
    *,
    inv_t, lam, n_total, tm, chunk, mm_dtype, needs_mask, needs_shift,
):
    i = pl.program_id(0)
    n_steps = pl.num_programs(0)

    # ---- one-time init: stream y from HBM in row chunks, normalize into yts -----------
    @pl.when(i == 0)
    def _init():
        acc_ref[...] = jnp.zeros_like(acc_ref)
        colsum_ref[...] = jnp.zeros_like(colsum_ref)
        if needs_shift:
            colmax_ref[...] = jnp.full(colmax_ref.shape, -jnp.inf, colmax_ref.dtype)

        n_full = n_total // chunk            # static python ints
        rem = n_total - n_full * chunk

        def _normed(rows_f32):
            ss = jnp.sum(rows_f32 * rows_f32, axis=-1, keepdims=True)
            return (rows_f32 * lax.rsqrt(jnp.maximum(ss, _EPS_SQ))).astype(mm_dtype)

        if n_full > 0:
            def _fill(k, carry):
                start = k * chunk
                if chunk % 8 == 0:
                    start = pl.multiple_of(start, 8)
                cp = pltpu.make_async_copy(
                    y_hbm.at[pl.ds(start, chunk), :], stage_ref, dma_sem.at[0])
                cp.start()
                cp.wait()
                yts_ref[pl.ds(start, chunk), :] = _normed(
                    stage_ref[...].astype(jnp.float32))
                return carry
            lax.fori_loop(0, n_full, _fill, 0)

        if rem > 0:
            start = n_full * chunk           # static, multiple of 8 when chunk >= 8
            cp = pltpu.make_async_copy(
                y_hbm.at[pl.ds(start, rem), :],
                stage_ref.at[pl.ds(0, rem), :], dma_sem.at[0])
            cp.start()
            cp.wait()
            yts_ref[pl.ds(start, rem), :] = _normed(
                stage_ref[pl.ds(0, rem), :].astype(jnp.float32))

    # ---- per-tile work ------------------------------------------------------------------
    yp_sf = _l2_normalize_f32(yp_ref, inv_t)              # [tm, D] f32, 1/T folded in
    yp_s = yp_sf.astype(mm_dtype)                         # MXU operand

    yrow_n = _l2_normalize_f32(yrow_ref)                  # [tm, D] f32
    diag = jnp.sum(yp_sf * yrow_n, axis=-1, keepdims=True)    # [tm, 1] = diag(sim)/T

    if needs_mask:
        iota = lax.broadcasted_iota(jnp.int32, (tm, 1), 0)
        valid = (i * tm + iota) < n_total                  # [tm, 1] bool
    else:
        valid = None

    # [tm, N] = (yp/||yp||/T) @ (y/||y||)^T -- NT contraction, no transpose copy
    sim_t = lax.dot_general(
        yp_s, yts_ref[...],
        dimension_numbers=(((1,), (1,)), ((), ())),
        preferred_element_type=jnp.float32,
    )

    if not needs_shift:
        # single exp pass feeds both the row logsumexp and the column exp-sums
        e = jnp.exp(sim_t)
        if needs_mask:
            e = jnp.where(valid, e, 0.0)
        colsum_ref[...] += jnp.sum(e, axis=0, keepdims=True)        # [1, N]
        rowsum = jnp.sum(e, axis=1, keepdims=True)                  # [tm, 1]
        if needs_mask:
            rowsum = jnp.where(valid, rowsum, 1.0)                  # avoid log(0)
        lse_row = jnp.log(rowsum)
    else:
        # numerically shifted fallback (extreme temperature / huge batch)
        m_row = jnp.max(sim_t, axis=1, keepdims=True)
        lse_row = m_row + jnp.log(
            jnp.sum(jnp.exp(sim_t - m_row), axis=1, keepdims=True))
        col_src = jnp.where(valid, sim_t, -jnp.inf) if needs_mask else sim_t
        m_new = jnp.maximum(colmax_ref[...],
                            jnp.max(col_src, axis=0, keepdims=True))    # [1, N]
        e_col = jnp.exp(sim_t - m_new)
        if needs_mask:
            e_col = jnp.where(valid, e_col, 0.0)
        colsum_ref[...] = (colsum_ref[...] * jnp.exp(colmax_ref[...] - m_new)
                           + jnp.sum(e_col, axis=0, keepdims=True))
        colmax_ref[...] = m_new

    per_row = diag - lam * lse_row                                   # [tm, 1]
    if needs_mask:
        per_row = jnp.where(valid, per_row, 0.0)
    acc_ref[...] += jnp.sum(per_row, axis=0, keepdims=True)

    # ---- finalize -------------------------------------------------------------------------
    @pl.when(i == n_steps - 1)
    def _finalize():
        if needs_shift:
            lse_col = colmax_ref[...] + jnp.log(colsum_ref[...])
        else:
            lse_col = jnp.log(colsum_ref[...])
        total = acc_ref[...] - (1.0 - lam) * jnp.sum(lse_col, axis=1, keepdims=True)
        out_ref[...] = -total / jnp.float32(n_total)


# --------------------------------------------------------------------------------------
# temperature <= 0 : only the diagonal of the cosine-similarity matrix is needed
# --------------------------------------------------------------------------------------
def _contrastive_diag_kernel(yp_ref, yrow_ref, out_ref, acc_ref, *,
                             n_total, tm, needs_mask):
    i = pl.program_id(0)
    n_steps = pl.num_programs(0)

    @pl.when(i == 0)
    def _init():
        acc_ref[...] = jnp.zeros_like(acc_ref)

    yp_n = _l2_normalize_f32(yp_ref)
    yrow_n = _l2_normalize_f32(yrow_ref)
    diag = jnp.sum(yp_n * yrow_n, axis=-1, keepdims=True)           # [tm, 1]
    if needs_mask:
        iota = lax.broadcasted_iota(jnp.int32, (tm, 1), 0)
        diag = jnp.where((i * tm + iota) < n_total, diag, 0.0)
    acc_ref[...] += jnp.sum(diag, axis=0, keepdims=True)

    @pl.when(i == n_steps - 1)
    def _finalize():
        out_ref[...] = -acc_ref[...] / jnp.float32(n_total)


# --------------------------------------------------------------------------------------
# wrapper
# --------------------------------------------------------------------------------------
def _vmem_budget_bytes():
    """~80% of the chip's per-core VMEM; conservative 64 MiB fallback if unknown."""
    cap = 64 << 20
    try:
        info = pltpu.get_tpu_info()
        cap = int(getattr(info, "vmem_capacity_bytes", cap)) or cap
    except Exception:
        pass
    return int(cap * 0.8)


def contrastive_loss(y_pred, y, temperature=0.5, lam=0.5, cos_weight=None,
                     row_block=256, matmul_dtype=None):
    """Pallas TPU forward of the PyTorch contrastive_loss module. Returns a scalar."""
    # TODO(synk): cos_weight is unused in the reference forward; kept for signature parity.
    n, d = y_pred.shape
    assert y.shape == (n, d), (y_pred.shape, y.shape)

    temperature = float(temperature)
    lam = float(lam)
    use_softmax = temperature > 0.0
    inv_t = (1.0 / temperature) if use_softmax else 1.0
    # |sim/T| <= 1/T and colsum <= N*exp(1/T); shift whenever exp could overflow f32.
    needs_shift = use_softmax and (inv_t + math.log(max(n, 2)) > 85.0)

    # MXU operand dtype: bf16 inputs stay bf16 (f32 accumulate); f32 stays f32 unless the
    # caller opts into bf16 operands (recommended on v5e, whose MXU has no fast f32 path).
    if matmul_dtype is None:
        mm_dtype = (jnp.bfloat16
                    if (y_pred.dtype == jnp.bfloat16 and y.dtype == jnp.bfloat16)
                    else jnp.float32)
    else:
        mm_dtype = jnp.bfloat16 if jnp.dtype(matmul_dtype) == jnp.bfloat16 else jnp.float32
    mm_itemsize = jnp.dtype(mm_dtype).itemsize
    yp_item = jnp.dtype(y_pred.dtype).itemsize
    y_item = jnp.dtype(y.dtype).itemsize

    # step-0 y-streaming chunk (rows)
    chunk = min(n, 512)
    if chunk >= 8:
        chunk = (chunk // 8) * 8

    # initial MXU-friendly row tile
    if n <= row_block:
        tm = n
    elif row_block >= 256:
        tm = max(256, (row_block // 256) * 256)
    else:
        tm = max(8, (row_block // 8) * 8)

    budget = _vmem_budget_bytes()

    def _need(t):
        b = 2 * t * d * (yp_item + y_item)        # double-buffered input row tiles
        if use_softmax:
            b += 3 * t * n * 4                    # [tm, N] f32 sim / exp temporaries
            b += n * d * mm_itemsize              # scaled-y scratch (single copy)
            b += chunk * d * y_item               # DMA staging buffer
            b += 2 * n * 4 + 64                   # colsum / colmax / acc
        return b + (2 << 20)                      # headroom

    # shrink the row tile (not just the limit) until the working set fits the chip
    while tm > 8 and _need(tm) > budget:
        new_tm = max(8, ((tm // 2) // 8) * 8)
        if new_tm == tm:
            break
        tm = new_tm

    n_tiles = pl.cdiv(n, tm)
    needs_mask = (n % tm) != 0
    vmem_bytes = int(min(budget, max(2 * _need(tm), 32 << 20)))

    if not use_softmax:
        kernel = functools.partial(_contrastive_diag_kernel,
                                   n_total=n, tm=tm, needs_mask=needs_mask)
        out = pl.pallas_call(
            kernel,
            out_shape=jax.ShapeDtypeStruct((1, 1), jnp.float32),
            grid_spec=pltpu.PrefetchScalarGridSpec(
                num_scalar_prefetch=0,
                grid=(n_tiles,),
                in_specs=[
                    pl.BlockSpec((tm, d), lambda i: (i, 0)),   # y_pred row tile
                    pl.BlockSpec((tm, d), lambda i: (i, 0)),   # matching y row tile
                ],
                out_specs=pl.BlockSpec((1, 1), lambda i: (0, 0)),
                scratch_shapes=[pltpu.VMEM((1, 1), jnp.float32)],
            ),
            compiler_params=pltpu.CompilerParams(
                dimension_semantics=("arbitrary",),
                vmem_limit_bytes=vmem_bytes,
            ),
        )(y_pred, y)
        return out[0, 0]

    kernel = functools.partial(
        _contrastive_softmax_kernel,
        inv_t=inv_t, lam=lam, n_total=n, tm=tm, chunk=chunk,
        mm_dtype=mm_dtype, needs_mask=needs_mask, needs_shift=needs_shift,
    )

    # TODO(synk): on v7x the single "arbitrary" row axis keeps one TensorCore idle; a
    # 2-core split needs per-core partial colsum/acc plus a tiny combine pass.
    out = pl.pallas_call(
        kernel,
        out_shape=jax.ShapeDtypeStruct((1, 1), jnp.float32),
        grid_spec=pltpu.PrefetchScalarGridSpec(
            num_scalar_prefetch=0,
            grid=(n_tiles,),
            in_specs=[
                pl.BlockSpec((tm, d), lambda i: (i, 0)),       # y_pred row tile
                pl.BlockSpec((tm, d), lambda i: (i, 0)),       # matching y row tile (diag)
                pl.BlockSpec(memory_space=pl.ANY),             # full y, stays in HBM
            ],
            out_specs=pl.BlockSpec((1, 1), lambda i: (0, 0)),
            scratch_shapes=[
                pltpu.VMEM((n, d), mm_dtype),        # normalized y (filled at step 0)
                pltpu.VMEM((chunk, d), y.dtype),     # DMA staging buffer
                pltpu.SemaphoreType.DMA((1,)),       # step-0 DMA semaphore
                pltpu.VMEM((1, n), jnp.float32),     # column exp-sums
                pltpu.VMEM((1, n), jnp.float32),     # running column max (shifted path)
                pltpu.VMEM((1, 1), jnp.float32),     # scalar accumulator
            ],
        ),
        compiler_params=pltpu.CompilerParams(
            dimension_semantics=("arbitrary",),      # row tiles reduce into the scalar
            vmem_limit_bytes=vmem_bytes,
        ),
    )(y_pred, y, y)
    return out[0, 0]


# --------------------------------------------------------------------------------------
# pure-JAX reference (mirrors torch semantics) + self-test
# --------------------------------------------------------------------------------------
def _reference_loss(y_pred, y, temperature=0.5, lam=0.5):
    eps = 1e-8
    yp = y_pred.astype(jnp.float32)
    yt = y.astype(jnp.float32)
    num = yp @ yt.T
    den = jnp.maximum(
        jnp.linalg.norm(yp, axis=-1, keepdims=True)
        * jnp.linalg.norm(yt, axis=-1, keepdims=True).T,
        eps,
    )
    sim = num / den
    if temperature > 0.0:
        sim = sim / temperature
        ls1 = jax.nn.log_softmax(sim, axis=1)
        ls0 = jax.nn.log_softmax(sim, axis=0)
        d1 = jnp.diagonal(ls1)
        d0 = jnp.diagonal(ls0)
        return jnp.mean(-(lam * d1 + (1.0 - lam) * d0))
    return jnp.mean(-jnp.diagonal(sim))


if __name__ == "__main__":
    key = jax.random.PRNGKey(0)
    k1, k2, k3, k4 = jax.random.split(key, 4)

    # normalization / 1/T are folded into the MXU operands, so rounding differs slightly
    # from the unfused reference matmul.
    TOL = dict(atol=5e-3, rtol=5e-3)

    # 1) main path: single tile, single-exp softmax
    N, D = 8, 32
    y_pred = jax.random.normal(k1, (N, D), dtype=jnp.float32)
    y = jax.random.normal(k2, (N, D), dtype=jnp.float32)
    loss = jax.block_until_ready(contrastive_loss(y_pred, y, temperature=0.5, lam=0.5))
    ref = _reference_loss(y_pred, y, temperature=0.5, lam=0.5)
    assert jnp.allclose(loss, ref, **TOL), (loss, ref)

    # 2) temperature <= 0 branch (diagonal-only kernel)
    loss0 = jax.block_until_ready(contrastive_loss(y_pred, y, temperature=0.0))
    ref0 = _reference_loss(y_pred, y, temperature=0.0)
    assert jnp.allclose(loss0, ref0, **TOL), (loss0, ref0)

    # 3) multi-tile path with a partial last tile (masking + accumulators)
    N2 = 20
    y_pred2 = jax.random.normal(k3, (N2, D), dtype=jnp.float32)
    y2 = jax.random.normal(k4, (N2, D), dtype=jnp.float32)
    loss2 = jax.block_until_ready(
        contrastive_loss(y_pred2, y2, temperature=0.5, lam=0.3, row_block=8))
    ref2 = _reference_loss(y_pred2, y2, temperature=0.5, lam=0.3)
    assert jnp.allclose(loss2, ref2, **TOL), (loss2, ref2)

    # 4) extreme-temperature fallback (shifted / online column logsumexp), multi-tile
    loss3 = jax.block_until_ready(
        contrastive_loss(y_pred2, y2, temperature=0.005, lam=0.5, row_block=8))
    ref3 = _reference_loss(y_pred2, y2, temperature=0.005, lam=0.5)
    assert jnp.allclose(loss3, ref3, **TOL), (loss3, ref3)

    print("KERNEL_OK")
</pallas_src>

<mosaic_0001>
module attributes {stable_mosaic.version = 11 : i64} {
  func.func @_contrastive_softmax_kernel(%arg0: i32, %arg1: memref<8x32xf32, #tpu.memory_space<vmem>>, %arg2: memref<8x32xf32, #tpu.memory_space<vmem>>, %arg3: memref<8x32xf32, #tpu.memory_space<any>>, %arg4: memref<1x1xf32, #tpu.memory_space<vmem>>, %arg5: memref<8x32xf32, #tpu.memory_space<vmem>>, %arg6: memref<8x32xf32, #tpu.memory_space<vmem>>, %arg7: memref<1x!tpu.dma_semaphore, #tpu.memory_space<semaphore_mem>>, %arg8: memref<1x8xf32, #tpu.memory_space<vmem>>, %arg9: memref<1x8xf32, #tpu.memory_space<vmem>>, %arg10: memref<1x1xf32, #tpu.memory_space<vmem>>) attributes {dimension_semantics = [#tpu.dimension_semantics<arbitrary>], iteration_bounds = array<i64: 1>, scalar_prefetch = 0 : i64, scratch_operands = 6 : i64, tpu.core_type = #tpu.core_type<tc>, window_params = [{transform_indices = @transform_0, window_bounds = array<i64: 8, 32>}, {transform_indices = @transform_1, window_bounds = array<i64: 8, 32>}, {}, {pipeline_mode = #tpu.pipeline_mode<synchronous>, transform_indices = @transform_3, window_bounds = array<i64: 1, 1>}]} {
    %c0_i32 = arith.constant 0 : i32
    %0 = arith.cmpi eq, %arg0, %c0_i32 : i32
    %1 = arith.extui %0 : i1 to i32
    %c0_i32_0 = arith.constant 0 : i32
    %2 = arith.cmpi ne, %1, %c0_i32_0 : i32
    scf.if %2 {
      %cst_27 = arith.constant 0.000000e+00 : f32
      %50 = vector.broadcast %cst_27 : f32 to vector<1x1xf32>
      %c0_28 = arith.constant 0 : index
      %c0_29 = arith.constant 0 : index
      %51 = vector.load %arg10[%c0_28, %c0_29] : memref<1x1xf32, #tpu.memory_space<vmem>>, vector<1x1xf32>
      tpu.vector_store %arg10[%c0_28, %c0_29], %50 {strides = array<i32>} : memref<1x1xf32, #tpu.memory_space<vmem>>, vector<1x1xf32>,
      %cst_30 = arith.constant 0.000000e+00 : f32
      %52 = vector.broadcast %cst_30 : f32 to vector<1x8xf32>
      %c0_31 = arith.constant 0 : index
      %c0_32 = arith.constant 0 : index
      %53 = vector.load %arg8[%c0_31, %c0_32] : memref<1x8xf32, #tpu.memory_space<vmem>>, vector<1x8xf32>
      tpu.vector_store %arg8[%c0_31, %c0_32], %52 {strides = array<i32>} : memref<1x8xf32, #tpu.memory_space<vmem>>, vector<1x8xf32>,
      %c0_i32_33 = arith.constant 0 : i32
      %c8_i32 = arith.constant 8 : i32
      %54 = arith.muli %c0_i32_33, %c8_i32 : i32
      %55 = tpu.assume_multiple %54, 8 : i32
      %c0_i32_34 = arith.constant 0 : i32
      %c0_i32_35 = arith.constant 0 : i32
      %56 = tpu.memref_slice %arg3[%55, %c0_i32_35] : memref<8x32xf32, #tpu.memory_space<any>> -> memref<8x32xf32, #tpu.memory_space<any>>
      %57 = tpu.memref_slice %arg7[%c0_i32_34] : memref<1x!tpu.dma_semaphore, #tpu.memory_space<semaphore_mem>> -> memref<1x!tpu.dma_semaphore, #tpu.memory_space<semaphore_mem>>
      %58 = tpu.memref_squeeze %57 : memref<1x!tpu.dma_semaphore, #tpu.memory_space<semaphore_mem>> -> memref<!tpu.dma_semaphore, #tpu.memory_space<semaphore_mem>>
      tpu.enqueue_dma source(%56 : memref<8x32xf32, #tpu.memory_space<any>>) target(%arg6 : memref<8x32xf32, #tpu.memory_space<vmem>>) target_semaphore(%58 : memref<!tpu.dma_semaphore, #tpu.memory_space<semaphore_mem>>)
      %c0_i32_36 = arith.constant 0 : i32
      %c0_i32_37 = arith.constant 0 : i32
      %59 = tpu.memref_slice %arg3[%55, %c0_i32_37] : memref<8x32xf32, #tpu.memory_space<any>> -> memref<8x32xf32, #tpu.memory_space<any>>
      %60 = tpu.memref_slice %arg7[%c0_i32_36] : memref<1x!tpu.dma_semaphore, #tpu.memory_space<semaphore_mem>> -> memref<1x!tpu.dma_semaphore, #tpu.memory_space<semaphore_mem>>
      %61 = tpu.memref_squeeze %60 : memref<1x!tpu.dma_semaphore, #tpu.memory_space<semaphore_mem>> -> memref<!tpu.dma_semaphore, #tpu.memory_space<semaphore_mem>>
      tpu.wait_dma2 semaphore(%61 : memref<!tpu.dma_semaphore, #tpu.memory_space<semaphore_mem>>) src(%59 : memref<8x32xf32, #tpu.memory_space<any>>) dst(%arg6 : memref<8x32xf32, #tpu.memory_space<vmem>>)
      %c0_38 = arith.constant 0 : index
      %c0_39 = arith.constant 0 : index
      %62 = vector.load %arg6[%c0_38, %c0_39] : memref<8x32xf32, #tpu.memory_space<vmem>>, vector<8x32xf32>
      %63 = arith.mulf %62, %62 : vector<8x32xf32>
      %cst_40 = arith.constant dense<0.000000e+00> : vector<8xf32>
      %64 = vector.multi_reduction <add>, %63, %cst_40 [1] : vector<8x32xf32> to vector<8xf32>
      %65 = vector.shape_cast %64 : vector<8xf32> to vector<8x1xf32>
      %cst_41 = arith.constant 1.000000e-16 : f32
      %66 = vector.broadcast %cst_41 : f32 to vector<8x1xf32>
      %67 = arith.maximumf %65, %66 : vector<8x1xf32>
      %68 = math.rsqrt %67 : vector<8x1xf32>
      %69 = vector.broadcast %68 : vector<8x1xf32> to vector<8x32xf32>
      %70 = arith.mulf %62, %69 : vector<8x32xf32>
      %71 = arith.index_cast %55 : i32 to index
      %c0_42 = arith.constant 0 : index
      %72 = vector.load %arg5[%71, %c0_42] : memref<8x32xf32, #tpu.memory_space<vmem>>, vector<8x32xf32>
      tpu.vector_store %arg5[%71, %c0_42], %70 {strides = array<i32>} : memref<8x32xf32, #tpu.memory_space<vmem>>, vector<8x32xf32>,
      %c1_i32 = arith.constant 1 : i32
    } else {
    }
    %c0 = arith.constant 0 : index
    %c0_1 = arith.constant 0 : index
    %3 = vector.load %arg1[%c0, %c0_1] : memref<8x32xf32, #tpu.memory_space<vmem>>, vector<8x32xf32>
    %4 = arith.mulf %3, %3 : vector<8x32xf32>
    %cst = arith.constant dense<0.000000e+00> : vector<8xf32>
    %5 = vector.multi_reduction <add>, %4, %cst [1] : vector<8x32xf32> to vector<8xf32>
    %6 = vector.shape_cast %5 : vector<8xf32> to vector<8x1xf32>
    %cst_2 = arith.constant 1.000000e-16 : f32
    %7 = vector.broadcast %cst_2 : f32 to vector<8x1xf32>
    %8 = arith.maximumf %6, %7 : vector<8x1xf32>
    %9 = math.rsqrt %8 : vector<8x1xf32>
    %cst_3 = arith.constant 2.000000e+00 : f32
    %10 = vector.broadcast %cst_3 : f32 to vector<8x1xf32>
    %11 = arith.mulf %9, %10 : vector<8x1xf32>
    %12 = vector.broadcast %11 : vector<8x1xf32> to vector<8x32xf32>
    %13 = arith.mulf %3, %12 : vector<8x32xf32>
    %c0_4 = arith.constant 0 : index
    %c0_5 = arith.constant 0 : index
    %14 = vector.load %arg2[%c0_4, %c0_5] : memref<8x32xf32, #tpu.memory_space<vmem>>, vector<8x32xf32>
    %15 = arith.mulf %14, %14 : vector<8x32xf32>
    %cst_6 = arith.constant dense<0.000000e+00> : vector<8xf32>
    %16 = vector.multi_reduction <add>, %15, %cst_6 [1] : vector<8x32xf32> to vector<8xf32>
    %17 = vector.shape_cast %16 : vector<8xf32> to vector<8x1xf32>
    %cst_7 = arith.constant 1.000000e-16 : f32
    %18 = vector.broadcast %cst_7 : f32 to vector<8x1xf32>
    %19 = arith.maximumf %17, %18 : vector<8x1xf32>
    %20 = math.rsqrt %19 : vector<8x1xf32>
    %cst_8 = arith.constant 1.000000e+00 : f32
    %21 = vector.broadcast %cst_8 : f32 to vector<8x1xf32>
    %22 = arith.mulf %20, %21 : vector<8x1xf32>
    %23 = vector.broadcast %22 : vector<8x1xf32> to vector<8x32xf32>
    %24 = arith.mulf %14, %23 : vector<8x32xf32>
    %25 = arith.mulf %13, %24 : vector<8x32xf32>
    %cst_9 = arith.constant dense<0.000000e+00> : vector<8xf32>
    %26 = vector.multi_reduction <add>, %25, %cst_9 [1] : vector<8x32xf32> to vector<8xf32>
    %27 = vector.shape_cast %26 : vector<8xf32> to vector<8x1xf32>
    %c0_10 = arith.constant 0 : index
    %c0_11 = arith.constant 0 : index
    %28 = vector.load %arg5[%c0_10, %c0_11] : memref<8x32xf32, #tpu.memory_space<vmem>>, vector<8x32xf32>
    %cst_12 = arith.constant dense<0.000000e+00> : vector<8x8xf32>
    %29 = tpu.matmul %13, %28, %cst_12 {dimension_numbers = #tpu.dot_dimension_numbers<[1], [1], [0], [0], [0, 0, 1, 0], [], []>} : vector<8x32xf32>, vector<8x32xf32>, vector<8x8xf32> -> vector<8x8xf32>
    %30 = math.exp %29 : vector<8x8xf32>
    %c0_13 = arith.constant 0 : index
    %c0_14 = arith.constant 0 : index
    %31 = vector.load %arg8[%c0_13, %c0_14] : memref<1x8xf32, #tpu.memory_space<vmem>>, vector<1x8xf32>
    %cst_15 = arith.constant dense<0.000000e+00> : vector<8xf32>
    %32 = vector.multi_reduction <add>, %30, %cst_15 [0] : vector<8x8xf32> to vector<8xf32>
    %33 = vector.shape_cast %32 : vector<8xf32> to vector<1x8xf32>
    %34 = arith.addf %31, %33 : vector<1x8xf32>
    %c0_16 = arith.constant 0 : index
    %c0_17 = arith.constant 0 : index
    %35 = vector.load %arg8[%c0_16, %c0_17] : memref<1x8xf32, #tpu.memory_space<vmem>>, vector<1x8xf32>
    tpu.vector_store %arg8[%c0_16, %c0_17], %34 {strides = array<i32>} : memref<1x8xf32, #tpu.memory_space<vmem>>, vector<1x8xf32>,
    %cst_18 = arith.constant dense<0.000000e+00> : vector<8xf32>
    %36 = vector.multi_reduction <add>, %30, %cst_18 [1] : vector<8x8xf32> to vector<8xf32>
    %37 = vector.shape_cast %36 : vector<8xf32> to vector<8x1xf32>
    %38 = math.log %37 : vector<8x1xf32>
    %cst_19 = arith.constant 5.000000e-01 : f32
    %39 = vector.broadcast %cst_19 : f32 to vector<8x1xf32>
    %40 = arith.mulf %39, %38 : vector<8x1xf32>
    %41 = arith.subf %27, %40 : vector<8x1xf32>
    %c0_20 = arith.constant 0 : index
    %c0_21 = arith.constant 0 : index
    %42 = vector.load %arg10[%c0_20, %c0_21] : memref<1x1xf32, #tpu.memory_space<vmem>>, vector<1x1xf32>
    %cst_22 = arith.constant dense<0.000000e+00> : vector<1xf32>
    %43 = vector.multi_reduction <add>, %41, %cst_22 [0] : vector<8x1xf32> to vector<1xf32>
    %44 = vector.shape_cast %43 : vector<1xf32> to vector<1x1xf32>
    %45 = arith.addf %42, %44 : vector<1x1xf32>
    %c0_23 = arith.constant 0 : index
    %c0_24 = arith.constant 0 : index
    %46 = vector.load %arg10[%c0_23, %c0_24] : memref<1x1xf32, #tpu.memory_space<vmem>>, vector<1x1xf32>
    tpu.vector_store %arg10[%c0_23, %c0_24], %45 {strides = array<i32>} : memref<1x1xf32, #tpu.memory_space<vmem>>, vector<1x1xf32>,
    %c0_i32_25 = arith.constant 0 : i32
    %47 = arith.cmpi eq, %arg0, %c0_i32_25 : i32
    %48 = arith.extui %47 : i1 to i32
    %c0_i32_26 = arith.constant 0 : i32
    %49 = arith.cmpi ne, %48, %c0_i32_26 : i32
    scf.if %49 {
      %c0_27 = arith.constant 0 : index
      %c0_28 = arith.constant 0 : index
      %50 = vector.load %arg8[%c0_27, %c0_28] : memref<1x8xf32, #tpu.memory_space<vmem>>, vector<1x8xf32>
      %51 = math.log %50 : vector<1x8xf32>
      %c0_29 = arith.constant 0 : index
      %c0_30 = arith.constant 0 : index
      %52 = vector.load %arg10[%c0_29, %c0_30] : memref<1x1xf32, #tpu.memory_space<vmem>>, vector<1x1xf32>
      %cst_31 = arith.constant dense<0.000000e+00> : vector<1xf32>
      %53 = vector.multi_reduction <add>, %51, %cst_31 [1] : vector<1x8xf32> to vector<1xf32>
      %54 = vector.shape_cast %53 : vector<1xf32> to vector<1x1xf32>
      %cst_32 = arith.constant 5.000000e-01 : f32
      %55 = vector.broadcast %cst_32 : f32 to vector<1x1xf32>
      %56 = arith.mulf %55, %54 : vector<1x1xf32>
      %57 = arith.subf %52, %56 : vector<1x1xf32>
      %cst_33 = arith.constant 0.000000e+00 : f32
      %58 = vector.broadcast %cst_33 : f32 to vector<1x1xf32>
      %59 = arith.subf %58, %57 : vector<1x1xf32>
      %cst_34 = arith.constant 8.000000e+00 : f32
      %60 = vector.broadcast %cst_34 : f32 to vector<1x1xf32>
      %61 = arith.divf %59, %60 : vector<1x1xf32>
      %c0_35 = arith.constant 0 : index
      %c0_36 = arith.constant 0 : index
      %62 = vector.load %arg4[%c0_35, %c0_36] : memref<1x1xf32, #tpu.memory_space<vmem>>, vector<1x1xf32>
      tpu.vector_store %arg4[%c0_35, %c0_36], %61 {strides = array<i32>} : memref<1x1xf32, #tpu.memory_space<vmem>>, vector<1x1xf32>,
    } else {
    }
    return
  }
  func.func @transform_0(%arg0: i32) -> (i32, i32) {
    %c0_i32 = arith.constant 0 : i32
    %c0_i32_0 = arith.constant 0 : i32
    return %arg0, %c0_i32 : i32, i32
  }
  func.func @transform_1(%arg0: i32) -> (i32, i32) {
    %c0_i32 = arith.constant 0 : i32
    %c0_i32_0 = arith.constant 0 : i32
    return %arg0, %c0_i32 : i32, i32
  }
  func.func @transform_3(%arg0: i32) -> (i32, i32) {
    %c0_i32 = arith.constant 0 : i32
    %c0_i32_0 = arith.constant 0 : i32
    %c0_i32_1 = arith.constant 0 : i32
    return %c0_i32, %c0_i32_0 : i32, i32
  }
}

</mosaic_0001>

<llo_original>
// kernel: tpu_custom_call.1
$region0: #{tpu_custom_call.1}
  #allocation0 [shape = 'u32[]', space=smem, size = 0x4, offset = 0x4, fixed_abs, tag = 'smem constant byte address 0x4 - core index']
  #allocation1 [shape = 'u32[144,128]{1,0:T(1,128)}', space=vmem, size = 0x12000, scoped, tag = 'internal scratch']
  #allocation2 [shape = 'f32[8,32]{1,0:T(8,128)}', space=vmem, size = 0x1000, scoped, tag = 'scratch operand']
  #allocation3 [shape = 'f32[8,32]{1,0:T(8,128)}', space=vmem, size = 0x1000, scoped, tag = 'scratch operand']
  #allocation4 [shape = 's32[1]{0}', space=sflag, size = 0x4, scoped, tag = 'scratch operand']
  #allocation5 [shape = 'f32[1,8]{1,0:T(1,128)}', space=vmem, size = 0x200, scoped, tag = 'scratch operand']
  #allocation6 [shape = 'f32[1,8]{1,0:T(1,128)}', space=vmem, size = 0x200, scoped, tag = 'scratch operand']
  #allocation7 [shape = 'f32[1,1]{1,0:T(1,128)}', space=vmem, size = 0x200, scoped, tag = 'scratch operand']
  #allocation14 [shape = 's32[]', space=sflag, size = 0x4, offset = 0, fixed_abs, tag = 'sflag constant byte address 0x0 - dummy sync flag']
  #allocation15 [shape = 's32[]', space=sflag, size = 0x4, offset = 0, fixed_abs, tag = 'sflag constant byte address 0x0 - dummy sync flag']
  #allocation16 [shape = 'u32[]', space=smem, size = 0x4, offset = 0x44, fixed_abs, tag = 'smem constant byte address 0x44 - assertion arg 0']
  #allocation17 [shape = 'u32[]', space=smem, size = 0x4, offset = 0x48, fixed_abs, tag = 'smem constant byte address 0x48 - assertion arg 1']
  %s0 = inlined_call_operand.hbm [shape: f32[8,32], index: 0, kind: input, shape index: {}]
  %s1 = inlined_call_operand.hbm [shape: f32[8,32], index: 1, kind: input, shape index: {}]
  %s2 = inlined_call_operand.hbm [shape: f32[8,32], index: 2, kind: input, shape index: {}]
  %s3 = inlined_call_operand.hbm [shape: f32[1,1], index: 3, kind: output, shape index: {}]
  %s4 = sld [smem:[#allocation0]]
  $region38: #{tpu_custom_call.1} parent=0
    _
  %s6 = ssub.s32 1, %s4
  %s7 = scalar_select 0, %s6, %s4
  $region1: #{tpu_custom_call.1} parent=0
    #allocation8 [shape = 'u8[4096]{0}', space=vmem, size = 0x1000, scoped, tag = 'input window, operand 0, single buffered']
    #allocation9 [shape = 's32[1]{0}', space=sflag, size = 0x4, scoped, tag = 'scoped memory for tpu_custom_call.1']
    #allocation10 [shape = 's32[1]{0}', space=sflag, size = 0x4, scoped, tag = 'scoped memory for tpu_custom_call.1']
    #allocation11 [shape = 'u8[4096]{0}', space=vmem, size = 0x1000, scoped, tag = 'input window, operand 1, single buffered']
    #allocation12 [shape = 's32[1]{0}', space=sflag, size = 0x4, scoped, tag = 'scoped memory for tpu_custom_call.1']
    #allocation13 [shape = 'u8[512]{0}', space=vmem, size = 0x400, scoped, tag = 'output window, operand 0, single buffered']
    %8 = vsyncpa [#allocation9], 0
    %9 = vsyncpa [#allocation12], 0
    %10 = vsyncpa [#allocation10], 0
    // Predicated region
    $region2: #{tpu_custom_call.1} parent=1 // pred_check
      _
    $region3: #{tpu_custom_call.1} parent=1 // pred_check_branch
      %12 = sbr.rel (0) target = $region5
    $region4: #{tpu_custom_call.1} parent=1 // pred_region
      %s14 = ssub.s32 128, 128
      %15 = vsyncadd [#allocation9], %s14
      %s17 = sshll.u32 [#allocation8], 4
      %s18 = int_to_ptr.vmem [resolvable:$true] %s17
      %20 = dma.hbm_to_vmem [thread:$0]  %s0, 128, %s18, [#allocation9]
    $region5: #{tpu_custom_call.1} parent=1 // pred_fallthru
      _
    // Predicated region
    $region6: #{tpu_custom_call.1} parent=1 // pred_check
      _
    $region7: #{tpu_custom_call.1} parent=1 // pred_check_branch
      %22 = sbr.rel (0) target = $region9
    $region8: #{tpu_custom_call.1} parent=1 // pred_region
      %s24 = ssub.s32 128, 128
      %25 = vsyncadd [#allocation12], %s24
      %s27 = sshll.u32 [#allocation11], 4
      %s28 = int_to_ptr.vmem [resolvable:$true] %s27
      %30 = dma.hbm_to_vmem [thread:$0]  %s1, 128, %s28, [#allocation12]
    $region9: #{tpu_custom_call.1} parent=1 // pred_fallthru
      _
    // Predicated region
    $region10: #{tpu_custom_call.1} parent=1 // pred_check
      _
    $region11: #{tpu_custom_call.1} parent=1 // pred_check_branch
      %32 = sbr.rel (0) target = $region13
    $region12: #{tpu_custom_call.1} parent=1 // pred_region
      %33 = dma.done [#allocation9], 128
    $region13: #{tpu_custom_call.1} parent=1 // pred_fallthru
      _
    // Predicated region
    $region14: #{tpu_custom_call.1} parent=1 // pred_check
      _
    $region15: #{tpu_custom_call.1} parent=1 // pred_check_branch
      %35 = sbr.rel (0) target = $region17
    $region16: #{tpu_custom_call.1} parent=1 // pred_region
      %36 = dma.done [#allocation12], 128
    $region17: #{tpu_custom_call.1} parent=1 // pred_fallthru
      _
    %p37 = scmp.eq.s32.totalorder 0, 0
    // Predicated region
    $region18: #{tpu_custom_call.1} parent=1 // pred_check
      %p38 = pneg %p37
    $region19: #{tpu_custom_call.1} parent=1 // pred_check_branch
      %40 = sbr.rel (%p38) target = $region21
    $region20: #{tpu_custom_call.1} parent=1 // pred_region
      %vm41 = vcmask 0
      %42 = vst.msk [vmem:[#allocation7] sm:$0x1] %vm41, 0.0
      %vm43 = vcmask 57344
      %44 = vst.msk [vmem:[#allocation5] sm:$0x1] %vm43, 0.0
      // Predicated region
      $region22: #{tpu_custom_call.1} parent=20 // pred_check
        _
      $region23: #{tpu_custom_call.1} parent=20 // pred_check_branch
        %46 = sbr.rel target = $region25
      $region24: #{tpu_custom_call.1} parent=20 // pred_region
        %47 = sst [smem:[#allocation16]] [#allocation15]
        %48 = sst [smem:[#allocation17]] [#allocation14]
      $region25: #{tpu_custom_call.1} parent=20 // pred_fallthru
        _
      %50 = shalt.err (0)
      %s52 = sshll.u32 [#allocation3], 4
      %s53 = int_to_ptr.vmem [resolvable:$true] %s52
      %55 = dma.hbm_to_vmem [thread:$0]  %s2, 128, %s53, [#allocation4]
      %s56 = smul.u32 8, 1
      %s57 = sshll.u32 %s56, 4
      %58 = dma.done [#allocation4], %s57
      %v59 = vld [vmem:[#allocation3] sm:$0xff]
      %v60 = vmul.f32 %v59, %v59
      %vm61 = vcmask 261120
      %v62 = vsel %vm61, %v60, 0.0
      %63 = vadd.xlane.f32.xlu0 %v62
      %v64 = vpop.xlane.xlu0 %63
      %v65 = vmax.f32 %v64, 1e-16
      %v66 = vrsqrt.pop %v65
      %v67 = vmul.f32 %v59, %v66
      %68 = vst.msk [vmem:[#allocation2] sm:$0xff] %vm61, %v67
    $region21: #{tpu_custom_call.1} parent=1 // pred_fallthru
      _
    %v69 = vld [vmem:[#allocation8] sm:$0xff]
    %v70 = vmul.f32 %v69, %v69
    %vm71 = vcmask 261120
    %v72 = vsel %vm71, %v70, 0.0
    %73 = vadd.xlane.f32.xlu0 %v72
    %v74 = vpop.xlane.xlu0 %73
    %v75 = vmax.f32 %v74, 1e-16
    %v76 = vrsqrt.pop %v75
    %v77 = vmul.f32 %v76, 2.0
    %v78 = vmul.f32 %v69, %v77
    %v79 = vld [vmem:[#allocation11] sm:$0xff]
    %v80 = vmul.f32 %v79, %v79
    %v81 = vsel %vm71, %v80, 0.0
    %82 = vadd.xlane.f32.xlu0 %v81
    %v83 = vpop.xlane.xlu0 %82
    %v84 = vmax.f32 %v83, 1e-16
    %v85 = vrsqrt.pop %v84
    %v86 = vmul.f32 %v79, %v85
    %v87 = vmul.f32 %v78, %v86
    %v88 = vsel %vm71, %v87, 0.0
    %89 = vadd.xlane.f32.xlu0 %v88
    %v90 = vpop.xlane.xlu0 %89
    %v91 = vld [vmem:[#allocation2] sm:$0xff]
    %v93 = vsel %vm71, %v78, 0
    %v96 = vsel %vm71, %v91, 0
    %98 = vmatprep.subr.mxu0 0.0
    %99 = vmatpush1.xpose.msra.mxu0 %v96
    %100 = vmatprep.subr.mxu0 0.0
    %101 = vmatpush1.xpose.msra.mxu0 0.0
    %102 = vmatprep.subr.mxu0 0.0
    %103 = vmatpush1.xpose.msra.mxu0 0.0
    %104 = vmatprep.subr.mxu0 0.0
    %105 = vmatpush1.xpose.msra.mxu0 0.0
    %106 = vmatprep.subr.mxu0 0.0
    %107 = vmatpush1.xpose.msra.mxu0 0.0
    %108 = vmatprep.subr.mxu0 0.0
    %109 = vmatpush1.xpose.msra.mxu0 0.0
    %110 = vmatprep.subr.mxu0 0.0
    %111 = vmatpush1.xpose.msra.mxu0 0.0
    %112 = vmatprep.subr.mxu0 0.0
    %113 = vmatpush1.xpose.msra.mxu0 0.0
    %114 = vmatprep.subr.mxu0 0.0
    %115 = vmatpush1.xpose.msra.mxu0 0.0
    %116 = vmatprep.subr.mxu0 0.0
    %117 = vmatpush1.xpose.msra.mxu0 0.0
    %118 = vmatprep.subr.mxu0 0.0
    %119 = vmatpush1.xpose.msra.mxu0 0.0
    %120 = vmatprep.subr.mxu0 0.0
    %121 = vmatpush1.xpose.msra.mxu0 0.0
    %122 = vmatprep.subr.mxu0 0.0
    %123 = vmatpush1.xpose.msra.mxu0 0.0
    %124 = vmatprep.subr.mxu0 0.0
    %125 = vmatpush1.xpose.msra.mxu0 0.0
    %126 = vmatprep.subr.mxu0 0.0
    %127 = vmatpush1.xpose.msra.mxu0 0.0
    %128 = vmatprep.subr.mxu0 0.0
    %129 = vmatpush1.xpose.msra.mxu0 0.0
    %130 = vmatprep.subr.mxu0 0.0
    %131 = vmatpush1.xpose.msra.mxu0 0.0
    %132 = vmatprep.subr.mxu0 0.0
    %133 = vmatpush1.xpose.msra.mxu0 0.0
    %134 = vmatprep.subr.mxu0 0.0
    %135 = vmatpush1.xpose.msra.mxu0 0.0
    %136 = vmatprep.subr.mxu0 0.0
    %137 = vmatpush1.xpose.msra.mxu0 0.0
    %138 = vmatprep.subr.mxu0 0.0
    %139 = vmatpush1.xpose.msra.mxu0 0.0
    %140 = vmatprep.subr.mxu0 0.0
    %141 = vmatpush1.xpose.msra.mxu0 0.0
    %142 = vmatprep.subr.mxu0 0.0
    %143 = vmatpush1.xpose.msra.mxu0 0.0
    %144 = vmatprep.subr.mxu0 0.0
    %145 = vmatpush1.xpose.msra.mxu0 0.0
    %146 = vmatprep.subr.mxu0 0.0
    %147 = vmatpush1.xpose.msra.mxu0 0.0
    %148 = vmatprep.subr.mxu0 0.0
    %149 = vmatpush1.xpose.msra.mxu0 0.0
    %150 = vmatprep.subr.mxu0 0.0
    %151 = vmatpush1.xpose.msra.mxu0 0.0
    %152 = vmatprep.subr.mxu0 0.0
    %153 = vmatpush1.xpose.msra.mxu0 0.0
    %154 = vmatprep.subr.mxu0 0.0
    %155 = vmatpush1.xpose.msra.mxu0 0.0
    %156 = vmatprep.subr.mxu0 0.0
    %157 = vmatpush1.xpose.msra.mxu0 0.0
    %158 = vmatprep.subr.mxu0 0.0
    %159 = vmatpush1.xpose.msra.mxu0 0.0
    %160 = vmatprep.subr.mxu0 0.0
    %161 = vmatpush1.xpose.msra.mxu0 0.0
    %162 = vmatprep.mubr.f32.mxu0 0.0
    %163 = vmatmul.mubr.f32.gmra.mrb[0].mxu0 %v93
    %v164 = vpop.f32.mrb[0].mxu0
    %v165 = vadd.f32 0.0, %v164
    %v166 = vpop.f32.mrb[0].mxu0
    %167 = vdwg.mxu0
    %v168 = vmul.f32 %v165, 1.442695
    %v169 = vpow.pop %v168
    %v170 = vld [vmem:[#allocation5] sm:$0x1]
    %vm171 = vcmask 64512
    %v172 = vsel %vm171, %v169, 0.0
    %v173 = vrot.slane %v172, 4
    %v174 = vadd.f32 %v172, %v173
    %v175 = vrot.slane %v174, 2
    %v176 = vadd.f32 %v174, %v175
    %v177 = vrot.slane %v176, 1
    %v178 = vadd.f32 %v176, %v177
    %v179 = vadd.f32 %v170, %v178
    %vm180 = vcmask 57344
    %181 = vst.msk [vmem:[#allocation5] sm:$0x1] %vm180, %v179
    %182 = vadd.xlane.f32.xlu0 %v172
    %v183 = vpop.xlane.xlu0 %182
    %v184 = vlog2.pop %v183
    %v185 = vmul.f32 %v184, 0.6931472
    %v186 = vmul.f32 %v185, 0.5
    %v187 = vsub.f32 %v90, %v186
    %v188 = vld [vmem:[#allocation7] sm:$0x1]
    %v189 = vrot.slane %v187, 4
    %v190 = vadd.f32 %v187, %v189
    %v191 = vrot.slane %v190, 2
    %v192 = vadd.f32 %v190, %v191
    %v193 = vrot.slane %v192, 1
    %v194 = vadd.f32 %v192, %v193
    %v195 = vadd.f32 %v188, %v194
    %vm196 = vcmask 0
    %197 = vst.msk [vmem:[#allocation7] sm:$0x1] %vm196, %v195
    // Predicated region
    $region26: #{tpu_custom_call.1} parent=1 // pred_check
      %p198 = pneg %p37
    $region27: #{tpu_custom_call.1} parent=1 // pred_check_branch
      %200 = sbr.rel (%p198) target = $region29
    $region28: #{tpu_custom_call.1} parent=1 // pred_region
      %v201 = vld [vmem:[#allocation5] sm:$0x1]
      %v202 = vlog2.pop %v201
      %v203 = vmul.f32 %v202, 0.6931472
      %v204 = vld [vmem:[#allocation7] sm:$0x1]
      %v205 = vsel %vm180, %v203, 0.0
      %206 = vadd.xlane.f32.xlu0 %v205
      %v207 = vpop.xlane.xlu0 %206
      %v208 = vmul.f32 %v207, 0.5
      %v209 = vsub.f32 %v204, %v208
      %v210 = vsub.f32 0.0, %v209
      %v211 = vrcp.pop 8.0
      %v212 = vmul.f32 %v210, %v211
      %213 = vst.msk [vmem:[#allocation13] sm:$0x1] %vm196, %v212
    $region29: #{tpu_custom_call.1} parent=1 // pred_fallthru
      _
    // Predicated region
    $region30: #{tpu_custom_call.1} parent=1 // pred_check
      _
    $region31: #{tpu_custom_call.1} parent=1 // pred_check_branch
      %215 = sbr.rel (0) target = $region33
    $region32: #{tpu_custom_call.1} parent=1 // pred_region
      %s217 = ssub.s32 16, 16
      %218 = vsyncadd [#allocation10], %s217
      %s220 = sshll.u32 [#allocation13], 4
      %s221 = int_to_ptr.vmem [resolvable:$true] %s220
      %223 = dma.vmem_to_hbm [thread:$0]  %s221, 16, %s3, [#allocation10]
    $region33: #{tpu_custom_call.1} parent=1 // pred_fallthru
      _
    // Predicated region
    $region34: #{tpu_custom_call.1} parent=1 // pred_check
      _
    $region35: #{tpu_custom_call.1} parent=1 // pred_check_branch
      %225 = sbr.rel (0) target = $region37
    $region36: #{tpu_custom_call.1} parent=1 // pred_region
      %226 = dma.done [#allocation10], 16
    $region37: #{tpu_custom_call.1} parent=1 // pred_fallthru
      _
    %227 = vsyncpa [#allocation9], 1
    %228 = vsyncpa [#allocation12], 1
    %229 = vsyncpa [#allocation10], 1
  %230 = vsyncmov [#allocation4]
  %s231 = vpop.sfrf %230
  %p232 = scmp.eq.s32.totalorder %s231, 0
  %p233 = pneg %p232
  %235 = shalt.err (%p233)

</llo_original>
